<compile_context>
chip_gen: v7x
topology: tpu7x:2x2x1
jax: 0.10.0
libtpu: 0.0.40
codegen_flags: <defaults>
</compile_context>

<pallas_src>
import functools

import jax
import jax.numpy as jnp
from jax.experimental import pallas as pl
from jax.experimental.pallas import tpu as pltpu

LANES = 128
SUBLANES = 8


def linear_kernel(x_ref, w_ref, b_ref, o_ref):
    # x_ref / o_ref: (block_rows, 128) VMEM tiles (batch flattened onto lanes).
    # w_ref / b_ref: (1, 1) SMEM scalars.
    w = w_ref[0, 0]
    b = b_ref[0, 0]
    x = x_ref[...].astype(jnp.float32)          # upcast is free; kernel is mem-bound
    o_ref[...] = (x * w + b).astype(o_ref.dtype)  # pure VPU multiply-add


@functools.partial(jax.jit, static_argnames=("block_rows",))
def my_linear_model(x, w, b, block_rows=8192):
    """x: (N, 1), w: (1, 1), b: (1,) -> (N, 1).  Matches nn.Linear(1, 1).

    block_rows < ~512 is test-only (per-grid-step overhead dominates otherwise).
    """
    n, in_f = x.shape
    out_f = w.shape[0]
    assert in_f == 1 and out_f == 1, "MyLinearModel is Linear(1, 1)"

    w_s = w.reshape(1, 1).astype(jnp.float32)
    b_s = b.reshape(1, 1).astype(jnp.float32)

    # ---- lane-dense reshape: batch on the 128-lane axis; pad at most 127 elems ----
    rows = pl.cdiv(n, LANES)
    pad = rows * LANES - n
    xf = x.reshape(-1)
    if pad:
        xf = jnp.pad(xf, (0, pad))  # keeps tail-block input lanes well-defined
    x2 = xf.reshape(rows, LANES)

    if rows <= block_rows:
        # Single block == full array (the (8,128) divisibility exception applies).
        block_rows_eff = rows
        grid_rows = 1
    else:
        # Balance block sizes so the last block isn't mostly padding; sublane-aligned.
        grid_rows = pl.cdiv(rows, block_rows)
        block_rows_eff = SUBLANES * pl.cdiv(pl.cdiv(rows, grid_rows), SUBLANES)
        grid_rows = pl.cdiv(rows, block_rows_eff)
        # Ragged last block is handled by Pallas: OOB output writes are masked.

    y2 = pl.pallas_call(
        linear_kernel,
        out_shape=jax.ShapeDtypeStruct((rows, LANES), x.dtype),
        grid=(grid_rows,),
        in_specs=[
            pl.BlockSpec((block_rows_eff, LANES), lambda i: (i, 0)),
            pl.BlockSpec(memory_space=pltpu.MemorySpace.SMEM),
            pl.BlockSpec(memory_space=pltpu.MemorySpace.SMEM),
        ],
        out_specs=pl.BlockSpec((block_rows_eff, LANES), lambda i: (i, 0)),
        compiler_params=pltpu.CompilerParams(
            dimension_semantics=("parallel",),
            vmem_limit_bytes=32 * 1024 * 1024,
        ),
    )(x2, w_s, b_s)

    # Under jit, XLA fuses this slice/reshape with the kernel boundary.
    return y2.reshape(-1)[:n].reshape(n, out_f)


if __name__ == "__main__":
    key = jax.random.PRNGKey(0)
    k_x, k_w, k_b, k_x2 = jax.random.split(key, 4)

    # Parameters matching nn.Linear(1, 1): weight (1, 1), bias (1,);
    # PyTorch default init bound = 1/sqrt(in_features) = 1.0
    w = jax.random.uniform(k_w, (1, 1), jnp.float32, minval=-1.0, maxval=1.0)
    b = jax.random.uniform(k_b, (1,), jnp.float32, minval=-1.0, maxval=1.0)

    # Small batch of scalar features (matches original demo): (8, 1), single block.
    x = jax.random.normal(k_x, (8, 1), jnp.float32)
    y = jax.block_until_ready(my_linear_model(x, w, b))
    y_ref = x @ w.T + b
    assert y.shape == (8, 1)
    assert jnp.allclose(y, y_ref, atol=1e-5), "mismatch vs reference (N=8)"

    # Larger batch exercising the multi-grid-step path with a ragged last block
    # (2500 elems -> 20 rows of 128 lanes -> 3 blocks of 8 rows, last block partial).
    # block_rows=8 is test-only; production default is 8192.
    x_big = jax.random.normal(k_x2, (2500, 1), jnp.float32)
    y_big = jax.block_until_ready(my_linear_model(x_big, w, b, block_rows=8))
    y_big_ref = x_big @ w.T + b
    assert y_big.shape == (2500, 1)
    assert jnp.allclose(y_big, y_big_ref, atol=1e-5), "mismatch vs reference (N=2500)"

    # bf16 path: input dtype is preserved through HBM, compute in f32 inside the kernel.
    x_bf = x_big.astype(jnp.bfloat16)
    y_bf = jax.block_until_ready(my_linear_model(x_bf, w, b))
    y_bf_ref = (x_bf.astype(jnp.float32) @ w.T + b).astype(jnp.bfloat16)
    assert y_bf.dtype == jnp.bfloat16
    assert jnp.allclose(y_bf.astype(jnp.float32), y_bf_ref.astype(jnp.float32),
                        atol=3e-2, rtol=3e-2), "mismatch vs reference (bf16)"

    print("KERNEL_OK")
</pallas_src>

<mosaic_0001>
module attributes {stable_mosaic.version = 11 : i64} {
  func.func @linear_kernel(%arg0: i32, %arg1: memref<1x128xf32, #tpu.memory_space<vmem>>, %arg2: memref<1x1xf32, #tpu.memory_space<smem>>, %arg3: memref<1x1xf32, #tpu.memory_space<smem>>, %arg4: memref<1x128xf32, #tpu.memory_space<vmem>>) attributes {dimension_semantics = [#tpu.dimension_semantics<parallel>], iteration_bounds = array<i64: 1>, scalar_prefetch = 0 : i64, scratch_operands = 0 : i64, tpu.core_type = #tpu.core_type<tc>, window_params = [{transform_indices = @transform_0, window_bounds = array<i64: 1, 128>}, {transform_indices = @transform_1, window_bounds = array<i64: 1, 1>}, {transform_indices = @transform_2, window_bounds = array<i64: 1, 1>}, {transform_indices = @transform_3, window_bounds = array<i64: 1, 128>}]} {
    %c0 = arith.constant 0 : index
    %c0_0 = arith.constant 0 : index
    %0 = memref.load %arg2[%c0, %c0_0] : memref<1x1xf32, #tpu.memory_space<smem>>
    %c0_1 = arith.constant 0 : index
    %c0_2 = arith.constant 0 : index
    %1 = memref.load %arg3[%c0_1, %c0_2] : memref<1x1xf32, #tpu.memory_space<smem>>
    %c0_3 = arith.constant 0 : index
    %c0_4 = arith.constant 0 : index
    %2 = vector.load %arg1[%c0_3, %c0_4] : memref<1x128xf32, #tpu.memory_space<vmem>>, vector<1x128xf32>
    %3 = vector.broadcast %0 : f32 to vector<1x128xf32>
    %4 = arith.mulf %2, %3 : vector<1x128xf32>
    %5 = vector.broadcast %1 : f32 to vector<1x128xf32>
    %6 = arith.addf %4, %5 : vector<1x128xf32>
    %c0_5 = arith.constant 0 : index
    %c0_6 = arith.constant 0 : index
    %7 = vector.load %arg4[%c0_5, %c0_6] : memref<1x128xf32, #tpu.memory_space<vmem>>, vector<1x128xf32>
    tpu.vector_store %arg4[%c0_5, %c0_6], %6 {strides = array<i32>} : memref<1x128xf32, #tpu.memory_space<vmem>>, vector<1x128xf32>,
    return
  }
  func.func @transform_0(%arg0: i32) -> (i32, i32) {
    %c0_i32 = arith.constant 0 : i32
    %c0_i32_0 = arith.constant 0 : i32
    return %arg0, %c0_i32 : i32, i32
  }
  func.func @transform_1(%arg0: i32) -> (i32, i32) {
    %c0_i32 = arith.constant 0 : i32
    %c0_i32_0 = arith.constant 0 : i32
    %c0_i32_1 = arith.constant 0 : i32
    return %c0_i32, %c0_i32_0 : i32, i32
  }
  func.func @transform_2(%arg0: i32) -> (i32, i32) {
    %c0_i32 = arith.constant 0 : i32
    %c0_i32_0 = arith.constant 0 : i32
    %c0_i32_1 = arith.constant 0 : i32
    return %c0_i32, %c0_i32_0 : i32, i32
  }
  func.func @transform_3(%arg0: i32) -> (i32, i32) {
    %c0_i32 = arith.constant 0 : i32
    %c0_i32_0 = arith.constant 0 : i32
    return %arg0, %c0_i32 : i32, i32
  }
}

</mosaic_0001>

<llo_original>
// kernel: my_linear_model.1
$region0: #{my_linear_model.1}
  #allocation0 [shape = 'u32[]', space=smem, size = 0x4, offset = 0x4, fixed_abs, tag = 'smem constant byte address 0x4 - core index']
  #allocation1 [shape = 'u32[144,128]{1,0:T(1,128)}', space=vmem, size = 0x12000, scoped, tag = 'internal scratch']
  #allocation2 [shape = 'f32[1,1]{1,0:T(1,128)S(6)}', space=smem, size = 0x200, scoped, tag = 'scoped memory for my_linear_model.1']
  #allocation3 [shape = 'f32[1,1]{1,0:T(1,128)S(6)}', space=smem, size = 0x200, scoped, tag = 'scoped memory for my_linear_model.1']
  %s0 = inlined_call_operand.vmem [shape: f32[1,128], index: 0, kind: input, shape index: {}]
  %s1 = inlined_call_operand.<no memory space> [shape: f32[1,1], index: 1, kind: input, shape index: {}]
  %s2 = inlined_call_operand.<no memory space> [shape: f32[1,1], index: 2, kind: input, shape index: {}]
  %s3 = inlined_call_operand.vmem [shape: f32[1,128], index: 3, kind: output, shape index: {}]
  %s4 = sld [smem:[#allocation0]]
  $region22: #{my_linear_model.1} parent=0
    _
  %s6 = ssub.s32 1, %s4
  %s7 = scalar_select 0, %s6, %s4
  %8 = sst [smem:[#allocation2]] %s1
  %9 = sst [smem:[#allocation3]] %s2
  // Predicated region
  $region2: #{my_linear_model.1} parent=0 // pred_check
    _
  $region3: #{my_linear_model.1} parent=0 // pred_check_branch
    %11 = sbr.rel (0) target = $region5
  $region4: #{my_linear_model.1} parent=0 // pred_region
    _
  $region5: #{my_linear_model.1} parent=0 // pred_fallthru
    _
  // Predicated region
  $region6: #{my_linear_model.1} parent=0 // pred_check
    _
  $region7: #{my_linear_model.1} parent=0 // pred_check_branch
    %13 = sbr.rel (0) target = $region9
  $region8: #{my_linear_model.1} parent=0 // pred_region
    _
  $region9: #{my_linear_model.1} parent=0 // pred_fallthru
    _
  // Predicated region
  $region10: #{my_linear_model.1} parent=0 // pred_check
    _
  $region11: #{my_linear_model.1} parent=0 // pred_check_branch
    %15 = sbr.rel (0) target = $region13
  $region12: #{my_linear_model.1} parent=0 // pred_region
    _
  $region13: #{my_linear_model.1} parent=0 // pred_fallthru
    _
  %s16 = sld [smem:[#allocation2]]
  %s17 = sld [smem:[#allocation3]]
  %v18 = vld [vmem:[%s0] sm:$0x1]
  %v19 = vstv %s16
  %v20 = vmul.f32 %v18, %v19
  %v21 = vstv %s17
  %v22 = vadd.f32 %v20, %v21
  %23 = vst [vmem:[%s3] sm:$0x1] %v22
  // Predicated region
  $region14: #{my_linear_model.1} parent=0 // pred_check
    _
  $region15: #{my_linear_model.1} parent=0 // pred_check_branch
    %25 = sbr.rel (0) target = $region17
  $region16: #{my_linear_model.1} parent=0 // pred_region
    _
  $region17: #{my_linear_model.1} parent=0 // pred_fallthru
    _
  // Predicated region
  $region18: #{my_linear_model.1} parent=0 // pred_check
    _
  $region19: #{my_linear_model.1} parent=0 // pred_check_branch
    %27 = sbr.rel (0) target = $region21
  $region20: #{my_linear_model.1} parent=0 // pred_region
    _
  $region21: #{my_linear_model.1} parent=0 // pred_fallthru
    _

</llo_original>
